<compile_context>
chip_gen: v7x
topology: tpu7x:2x2x1
jax: 0.10.0
libtpu: 0.0.40
codegen_flags: <defaults>
</compile_context>

<pallas_src>
import functools

import jax
import jax.numpy as jnp
from jax.experimental import pallas as pl
from jax.experimental.pallas import tpu as pltpu


def _mask_kernel(m_ref, x_ref, o_ref, *, apply_sigmoid):
    # m_ref: (C, 1) resident mask parameter.
    # x_ref / o_ref: (C, T_HW) tile (leading batch dim squeezed away).
    m = m_ref[...].astype(jnp.float32)
    if apply_sigmoid:
        m = jax.nn.sigmoid(m)
    s = m.astype(x_ref.dtype)          # tiny (C, 1) cast; multiply in native dtype
    o_ref[...] = s * x_ref[...]        # broadcast along lanes, load->mul->store


def _choose_hw_tile(C, HW, itemsize, target_bytes):
    """Lane tile: multiple of 128 that divides HW, ~target_bytes per x block."""
    if HW % 128 != 0:
        # Lane-starved / ragged spatial dim (e.g. 7x7=49): use the full extent,
        # which is always a legal block (block == array dim).
        # TODO(synk): for small-HW / large-C layers a (HW, C) layout with C on
        # the lane axis would give unmasked, lane-dense stores.
        return HW
    max_t = max(128, ((target_bytes // max(1, C * itemsize)) // 128) * 128)
    t = min(HW, max_t)
    while HW % t != 0:                 # terminates at 128 since HW % 128 == 0
        t -= 128
    return t


def mask_forward(x, mask, finding_masks=True, *,
                 min_pallas_bytes=1 << 20,
                 hw_tile_target_bytes=2 << 20):
    """x: (N, C, H, W); mask: (1, C, 1, 1). Returns sigmoid(mask)*x (or mask*x)."""
    N, C, H, W = x.shape
    assert mask.shape == (1, C, 1, 1)
    HW = H * W
    itemsize = jnp.dtype(x.dtype).itemsize

    # Small-activation fallback: fused XLA elementwise beats the fixed
    # pallas_call + per-grid-step overhead for tiny tensors.
    if x.size * itemsize < min_pallas_bytes:
        m = mask.astype(jnp.float32)
        m = jax.nn.sigmoid(m) if finding_masks else m
        return (m.astype(x.dtype) * x).astype(x.dtype)

    x3 = x.reshape(N, C, HW)
    m2 = mask.reshape(C, 1)

    t_hw = _choose_hw_tile(C, HW, itemsize, hw_tile_target_bytes)
    grid = (N, HW // t_hw)

    kernel = functools.partial(_mask_kernel, apply_sigmoid=finding_masks)

    out3 = pl.pallas_call(
        kernel,
        out_shape=jax.ShapeDtypeStruct((N, C, HW), x.dtype),
        grid_spec=pltpu.PrefetchScalarGridSpec(
            num_scalar_prefetch=0,
            grid=grid,
            in_specs=[
                # Mask parameter: resident across the whole grid.
                pl.BlockSpec((C, 1), lambda n, h: (0, 0)),
                # x tile: one batch element, full C (sublanes), T_HW lanes.
                pl.BlockSpec((pl.Squeezed(), C, t_hw), lambda n, h: (n, 0, h)),
            ],
            out_specs=pl.BlockSpec((pl.Squeezed(), C, t_hw), lambda n, h: (n, 0, h)),
        ),
        compiler_params=pltpu.CompilerParams(
            dimension_semantics=("parallel", "parallel"),
            vmem_limit_bytes=32 * 1024 * 1024,
        ),
    )(m2, x3)
    return out3.reshape(N, C, H, W)


def _ref(x, mask, finding_masks):
    m = jax.nn.sigmoid(mask.astype(jnp.float32)) if finding_masks else mask.astype(jnp.float32)
    return (m.astype(x.dtype) * x).astype(x.dtype)


if __name__ == "__main__":
    key = jax.random.PRNGKey(0)
    k_mask, k_x, k_mask2, k_x2 = jax.random.split(key, 4)

    # --- Test 1: small f32 case, force the Pallas path (sigmoid and plain). ---
    N, C, H, W = 2, 4, 16, 16
    mask = jax.random.normal(k_mask, (1, C, 1, 1), dtype=jnp.float32)
    x = jax.random.normal(k_x, (N, C, H, W), dtype=jnp.float32)

    out = jax.block_until_ready(
        mask_forward(x, mask, finding_masks=True, min_pallas_bytes=0))
    assert out.shape == x.shape
    assert jnp.allclose(out, _ref(x, mask, True), atol=1e-5, rtol=1e-5)

    out_plain = jax.block_until_ready(
        mask_forward(x, mask, finding_masks=False, min_pallas_bytes=0))
    assert jnp.allclose(out_plain, _ref(x, mask, False), atol=1e-5, rtol=1e-5)

    # Default path (tiny tensor -> fused XLA fallback) must match too.
    out_fb = jax.block_until_ready(mask_forward(x, mask, finding_masks=True))
    assert jnp.allclose(out_fb, _ref(x, mask, True), atol=1e-5, rtol=1e-5)

    # --- Test 2: bf16 case with a tiny tile target to exercise HW tiling. ---
    N2, C2, H2, W2 = 2, 8, 16, 32          # HW = 512 -> 4 tiles of 128 lanes
    mask2 = jax.random.normal(k_mask2, (1, C2, 1, 1), dtype=jnp.float32)
    x2 = jax.random.normal(k_x2, (N2, C2, H2, W2), dtype=jnp.bfloat16)

    out2 = jax.block_until_ready(
        mask_forward(x2, mask2, finding_masks=True,
                     min_pallas_bytes=0, hw_tile_target_bytes=4096))
    assert out2.shape == x2.shape
    assert jnp.allclose(out2.astype(jnp.float32),
                        _ref(x2, mask2, True).astype(jnp.float32),
                        atol=1e-2, rtol=1e-2)

    print("KERNEL_OK")
</pallas_src>

<mosaic_0001>
module attributes {stable_mosaic.version = 11 : i64} {
  func.func @_mask_kernel(%arg0: i32, %arg1: i32, %arg2: memref<4x1xf32, #tpu.memory_space<vmem>>, %arg3: memref<1x4x256xf32, #tpu.memory_space<vmem>>, %arg4: memref<1x4x256xf32, #tpu.memory_space<vmem>>) attributes {dimension_semantics = [#tpu.dimension_semantics<parallel>, #tpu.dimension_semantics<parallel>], iteration_bounds = array<i64: 2, 1>, scalar_prefetch = 0 : i64, scratch_operands = 0 : i64, tpu.core_type = #tpu.core_type<tc>, window_params = [{pipeline_mode = #tpu.pipeline_mode<synchronous>, transform_indices = @transform_0, window_bounds = array<i64: 4, 1>}, {transform_indices = @transform_1, window_bounds = array<i64: 1, 4, 256>}, {transform_indices = @transform_2, window_bounds = array<i64: 1, 4, 256>}]} {
    %c0 = arith.constant 0 : index
    %c0_0 = arith.constant 0 : index
    %0 = vector.load %arg2[%c0, %c0_0] : memref<4x1xf32, #tpu.memory_space<vmem>>, vector<4x1xf32>
    %1 = arith.negf %0 : vector<4x1xf32>
    %2 = math.exp %1 : vector<4x1xf32>
    %cst = arith.constant 1.000000e+00 : f32
    %3 = vector.broadcast %cst : f32 to vector<4x1xf32>
    %4 = arith.addf %3, %2 : vector<4x1xf32>
    %5 = arith.divf %3, %4 : vector<4x1xf32>
    %c0_1 = arith.constant 0 : index
    %c0_2 = arith.constant 0 : index
    %c0_3 = arith.constant 0 : index
    %6 = vector.load %arg3[%c0_1, %c0_2, %c0_3] : memref<1x4x256xf32, #tpu.memory_space<vmem>>, vector<1x4x256xf32>
    %7 = vector.shape_cast %6 : vector<1x4x256xf32> to vector<4x256xf32>
    %8 = vector.broadcast %5 : vector<4x1xf32> to vector<4x256xf32>
    %9 = arith.mulf %8, %7 : vector<4x256xf32>
    %c0_4 = arith.constant 0 : index
    %c0_5 = arith.constant 0 : index
    %c0_6 = arith.constant 0 : index
    %10 = vector.load %arg4[%c0_4, %c0_5, %c0_6] : memref<1x4x256xf32, #tpu.memory_space<vmem>>, vector<1x4x256xf32>
    %11 = vector.shape_cast %10 : vector<1x4x256xf32> to vector<4x256xf32>
    %12 = vector.shape_cast %9 : vector<4x256xf32> to vector<1x4x256xf32>
    tpu.vector_store %arg4[%c0_4, %c0_5, %c0_6], %12 {strides = array<i32>} : memref<1x4x256xf32, #tpu.memory_space<vmem>>, vector<1x4x256xf32>,
    return
  }
  func.func @transform_0(%arg0: i32, %arg1: i32) -> (i32, i32) {
    %c0_i32 = arith.constant 0 : i32
    %c0_i32_0 = arith.constant 0 : i32
    %c0_i32_1 = arith.constant 0 : i32
    return %c0_i32, %c0_i32_0 : i32, i32
  }
  func.func @transform_1(%arg0: i32, %arg1: i32) -> (i32, i32, i32) {
    %c0_i32 = arith.constant 0 : i32
    %c0_i32_0 = arith.constant 0 : i32
    return %arg0, %c0_i32, %arg1 : i32, i32, i32
  }
  func.func @transform_2(%arg0: i32, %arg1: i32) -> (i32, i32, i32) {
    %c0_i32 = arith.constant 0 : i32
    %c0_i32_0 = arith.constant 0 : i32
    return %arg0, %c0_i32, %arg1 : i32, i32, i32
  }
}

</mosaic_0001>

<llo_original>
// kernel: tpu_custom_call.1
$region0: #{tpu_custom_call.1}
  #allocation0 [shape = 'u32[]', space=smem, size = 0x4, offset = 0x4, fixed_abs, tag = 'smem constant byte address 0x4 - core index']
  #allocation1 [shape = 'u32[144,128]{1,0:T(1,128)}', space=vmem, size = 0x12000, scoped, tag = 'internal scratch']
  %s0 = inlined_call_operand.vmem [shape: f32[4,1], index: 0, kind: input, shape index: {}]
  %s1 = inlined_call_operand.hbm [shape: f32[2,4,256], index: 1, kind: input, shape index: {}]
  %s2 = inlined_call_operand.hbm [shape: f32[2,4,256], index: 2, kind: output, shape index: {}]
  %s3 = sld [smem:[#allocation0]]
  $region45: #{tpu_custom_call.1} parent=0
    _
  %s5 = ssub.s32 1, %s3
  %s6 = scalar_select 0, %s5, %s3
  $region1: #{tpu_custom_call.1} parent=0
    #allocation2 [shape = 'u8[8192]{0}', space=vmem, size = 0x2000, scoped, tag = 'input window, operand 1']
    #allocation3 [shape = 's32[2]{0}', space=sflag, size = 0x8, scoped, tag = 'scoped memory for tpu_custom_call.1']
    #allocation4 [shape = 's32[2]{0}', space=sflag, size = 0x8, scoped, tag = 'scoped memory for tpu_custom_call.1']
    #allocation5 [shape = 'u8[8192]{0}', space=vmem, size = 0x2000, scoped, tag = 'output window, operand 0']
    %7 = vsyncpa [#allocation3], 0
    %s8 = scalar_lea.sflag [#allocation3], 1
    %9 = vsyncpa %s8, 0
    %10 = vsyncpa [#allocation4], 0
    %s11 = scalar_lea.sflag [#allocation4], 1
    %12 = vsyncpa %s11, 0
    loop: start=0, step=1, limit=4
    $region2: #{tpu_custom_call.1} parent=1 // loop_pre_header
      _
    $region3: #{tpu_custom_call.1} parent=1 // loop_header
      %s14 = sphi 0, %s18
      %p15 = scmp.ge.s32.totalorder %s14, 4
      %s21 = sphi 0, %s33
      %s22 = sphi 0, %s29
      %s23 = sphi 0, %s21
      %s24 = sphi 0, %s22
      %s25 = sphi 0, %s23
      %s26 = sphi 0, %s24
      %s34 = sphi 0, %s34
      %s36 = sphi 0, %s34
      %s37 = sphi 0, %s36
      %s51 = sphi 0, %s37
      %s59 = sphi 0, %s61
      %s62 = sphi 0, %s59
      %s63 = sphi 0, %s62
      %s79 = sphi 0, %s63
      %s87 = sphi 0, %s89
      %s90 = sphi 0, %s87
      %s91 = sphi 0, %s90
      %s107 = sphi 0, %s91
    $region4: #{tpu_custom_call.1} parent=1 // loop_header_branch
      %17 = sbr.rel (%p15) target = $region8
    $region5: #{tpu_custom_call.1} parent=1 // loop_body
      %s19 = ssub.s32 %s14, 1
      %s20 = ssub.s32 %s14, 2
      %s27 = sadd.s32 1, %s22
      %p28 = scmp.ge.s32.totalorder %s27, 1
      %s29 = scalar_select %p28, 0, %s27
      %s30 = sadd.s32 1, %s21
      %s31 = scalar_select %p28, %s30, %s21
      %p32 = scmp.ge.s32.totalorder %s31, 2
      %s33 = scalar_select %p32, 0, %s31
      %s35 = sadd.s32 %s34, 1
      %p38 = scmp.eq.s32.totalorder %s14, 1
      %p39 = scmp.ne.s32.totalorder %s34, %s36
      %p40 = scmp.eq.s32.totalorder %s14, 0
      %p41 = por %p39, %p40
      %p42 = scmp.ne.s32.totalorder %s34, %s36
      %p43 = scmp.eq.s32.totalorder %s19, 1
      %p44 = por %p42, %p43
      %p45 = scmp.ne.s32.totalorder %s36, %s37
      %p46 = scmp.eq.s32.totalorder %s19, 0
      %p47 = por %p45, %p46
      %p48 = scmp.ne.s32.totalorder %s36, %s37
      %p49 = scmp.eq.s32.totalorder %s20, 1
      %p50 = por %p48, %p49
      %p52 = scmp.ne.s32.totalorder %s37, %s51
      %p53 = scmp.eq.s32.totalorder %s20, 0
      %p54 = por %p52, %p53
      %s55 = ssub.s32 %s21, %s33
      %s56 = ssub.s32 %s22, %s29
      %s57 = sor.u32 %s55, %s56
      %p58 = scmp.eq.s32.totalorder %s57, 0
      %s60 = sadd.s32 %s59, 1
      %s61 = scalar_select %p58, %s59, %s60
      %p64 = pneg %p58
      %p65 = scmp.eq.s32.totalorder %s14, 1
      %p66 = por %p64, %p65
      %p67 = scmp.ne.s32.totalorder %s59, %s62
      %p68 = scmp.eq.s32.totalorder %s14, 0
      %p69 = por %p67, %p68
      %p70 = scmp.ne.s32.totalorder %s59, %s62
      %p71 = scmp.eq.s32.totalorder %s19, 1
      %p72 = por %p70, %p71
      %p73 = scmp.ne.s32.totalorder %s62, %s63
      %p74 = scmp.eq.s32.totalorder %s19, 0
      %p75 = por %p73, %p74
      %p76 = scmp.ne.s32.totalorder %s62, %s63
      %p77 = scmp.eq.s32.totalorder %s20, 1
      %p78 = por %p76, %p77
      %p80 = scmp.ne.s32.totalorder %s63, %s79
      %p81 = scmp.eq.s32.totalorder %s20, 0
      %p82 = por %p80, %p81
      %s83 = ssub.s32 %s21, %s33
      %s84 = ssub.s32 %s22, %s29
      %s85 = sor.u32 %s83, %s84
      %p86 = scmp.eq.s32.totalorder %s85, 0
      %s88 = sadd.s32 %s87, 1
      %s89 = scalar_select %p86, %s87, %s88
      %p92 = pneg %p86
      %p93 = scmp.eq.s32.totalorder %s14, 1
      %p94 = por %p92, %p93
      %p95 = scmp.ne.s32.totalorder %s87, %s90
      %p96 = scmp.eq.s32.totalorder %s14, 0
      %p97 = por %p95, %p96
      %p98 = scmp.ne.s32.totalorder %s87, %s90
      %p99 = scmp.eq.s32.totalorder %s19, 1
      %p100 = por %p98, %p99
      %p101 = scmp.ne.s32.totalorder %s90, %s91
      %p102 = scmp.eq.s32.totalorder %s19, 0
      %p103 = por %p101, %p102
      %p104 = scmp.ne.s32.totalorder %s90, %s91
      %p105 = scmp.eq.s32.totalorder %s20, 1
      %p106 = por %p104, %p105
      %p108 = scmp.ne.s32.totalorder %s91, %s107
      %p109 = scmp.eq.s32.totalorder %s20, 0
      %p110 = por %p108, %p109
      %p111 = scmp.le.s32.totalorder 1, %s14
      %p112 = scmp.lt.s32.totalorder %s14, 3
      %p113 = pnand %p111, %p112
      %p114 = pneg %p113
      // Predicated region
      $region9: #{tpu_custom_call.1} parent=5 // pred_check
        _
      $region10: #{tpu_custom_call.1} parent=5 // pred_check_branch
        %116 = sbr.rel (%p113) target = $region12
      $region11: #{tpu_custom_call.1} parent=5 // pred_region
        %s117 = ssub.s32 %s14, 1
        // Predicated region
        $region13: #{tpu_custom_call.1} parent=11 // pred_check
          %p118 = pneg %p47
        $region14: #{tpu_custom_call.1} parent=11 // pred_check_branch
          %120 = sbr.rel (%p118) target = $region16
        $region15: #{tpu_custom_call.1} parent=11 // pred_region
          _
        $region16: #{tpu_custom_call.1} parent=11 // pred_fallthru
          _
      $region12: #{tpu_custom_call.1} parent=5 // pred_fallthru
        _
      %p121 = scmp.lt.s32.totalorder %s14, 2
      // Predicated region
      $region17: #{tpu_custom_call.1} parent=5 // pred_check
        %p122 = pneg %p121
      $region18: #{tpu_custom_call.1} parent=5 // pred_check_branch
        %124 = sbr.rel (%p122) target = $region20
      $region19: #{tpu_custom_call.1} parent=5 // pred_region
        // Predicated region
        $region21: #{tpu_custom_call.1} parent=19 // pred_check
          %p125 = pneg %p69
        $region22: #{tpu_custom_call.1} parent=19 // pred_check_branch
          %127 = sbr.rel (%p125) target = $region24
        $region23: #{tpu_custom_call.1} parent=19 // pred_region
          %s128 = sand.u32 %s59, 1
          %s129 = scalar_lea.sflag [#allocation3], %s128
          %s130 = sand.u32 %s59, 1
          %s131 = smul.addr %s130, 8
          %s132 = scalar_lea.vmem [#allocation2], %s131
          %s133 = smul.u32 2, %s22
          %s135 = ssub.s32 128, 128
          %136 = vsyncadd %s129, %s135
          %s137 = smul.addr %s21, 2
          %s138 = sadd.s32 %s133, %s137
          %s139 = smul.addr %s138, 64
          %s140 = scalar_lea.hbm %s1, %s139
          %s142 = sshll.u32 %s132, 4
          %s143 = int_to_ptr.vmem [resolvable:$true] %s142
          %145 = dma.hbm_to_vmem [thread:$0]  %s140, 128, %s143, %s129
        $region24: #{tpu_custom_call.1} parent=19 // pred_fallthru
          _
      $region20: #{tpu_custom_call.1} parent=5 // pred_fallthru
        _
      %p146 = scmp.le.s32.totalorder 1, %s14
      %p147 = scmp.lt.s32.totalorder %s14, 3
      %p148 = pnand %p146, %p147
      %p149 = pneg %p148
      // Predicated region
      $region25: #{tpu_custom_call.1} parent=5 // pred_check
        _
      $region26: #{tpu_custom_call.1} parent=5 // pred_check_branch
        %151 = sbr.rel (%p148) target = $region28
      $region27: #{tpu_custom_call.1} parent=5 // pred_region
        %s152 = ssub.s32 %s14, 1
        %s153 = sand.u32 %s62, 1
        %s154 = scalar_lea.sflag [#allocation3], %s153
        %s155 = sand.u32 %s62, 1
        %s156 = smul.addr %s155, 8
        %s157 = scalar_lea.vmem [#allocation2], %s156
        // Predicated region
        $region29: #{tpu_custom_call.1} parent=27 // pred_check
          %p158 = pneg %p75
        $region30: #{tpu_custom_call.1} parent=27 // pred_check_branch
          %160 = sbr.rel (%p158) target = $region32
        $region31: #{tpu_custom_call.1} parent=27 // pred_region
          %161 = dma.done %s154, 128
        $region32: #{tpu_custom_call.1} parent=27 // pred_fallthru
          _
        %p162 = pneg %p47
        %p163 = pneg %p44
        %s164 = sand.u32 %s62, 1
        %s165 = scalar_lea.sflag [#allocation3], %s164
        %s166 = sand.u32 %s62, 1
        %s167 = smul.addr %s166, 8
        %s168 = scalar_lea.vmem [#allocation2], %s167
        %p169 = pneg %p75
        %p170 = pneg %p72
        %p171 = pneg %p103
        %p172 = pneg %p100
        %s173 = sand.u32 %s90, 1
        %s174 = scalar_lea.sflag [#allocation4], %s173
        %s175 = sand.u32 %s90, 1
        %s176 = smul.addr %s175, 8
        %s177 = scalar_lea.vmem [#allocation5], %s176
        %s178 = smul.u32 2, %s24
        %s179 = smul.u32 2, %s24
        %v180 = vld [vmem:[%s0] sm:$0xf]
        %v181 = vxor.u32 %v180, 2147483648
        %v182 = vmul.f32 %v181, 1.442695
        %v183 = vpow.pop %v182
        %v184 = vadd.f32 %v183, 1.0
        %v185 = vrcp.pop %v184
        %v186 = vmul.f32 1.0, %v185
        %v187 = vld [vmem:[%s157] sm:$0xff]
        %189 = vset.pattern.permute.xlu0 0
        %190 = vperm.xlu0 %189, %v186
        %v191 = vpop.permute.xlu0 %190
        %v194 = vcombine.high %v187, %v187
        %v196 = vmul.f32 %v191, %v187
        %v197 = vmul.f32 %v191, %v194
        %v200 = vcombine.low %v196, %v197
        %202 = vst [vmem:[%s177] sm:$0xff] %v200
        %s203 = sand.u32 %s90, 1
        %s204 = scalar_lea.sflag [#allocation4], %s203
        %s205 = sand.u32 %s90, 1
        %s206 = smul.addr %s205, 8
        %s207 = scalar_lea.vmem [#allocation5], %s206
        // Predicated region
        $region33: #{tpu_custom_call.1} parent=27 // pred_check
          %p208 = pneg %p100
        $region34: #{tpu_custom_call.1} parent=27 // pred_check_branch
          %210 = sbr.rel (%p208) target = $region36
        $region35: #{tpu_custom_call.1} parent=27 // pred_region
          %s211 = smul.u32 2, %s24
          %s213 = ssub.s32 128, 128
          %214 = vsyncadd %s204, %s213
          %s215 = smul.addr %s23, 2
          %s216 = sadd.s32 %s211, %s215
          %s217 = smul.addr %s216, 64
          %s218 = scalar_lea.hbm %s2, %s217
          %s220 = sshll.u32 %s207, 4
          %s221 = int_to_ptr.vmem [resolvable:$true] %s220
          %223 = dma.vmem_to_hbm [thread:$0]  %s221, 128, %s218, %s204
        $region36: #{tpu_custom_call.1} parent=27 // pred_fallthru
          _
      $region28: #{tpu_custom_call.1} parent=5 // pred_fallthru
        _
      %p224 = scmp.le.s32.totalorder 2, %s14
      // Predicated region
      $region37: #{tpu_custom_call.1} parent=5 // pred_check
        %p225 = pneg %p224
      $region38: #{tpu_custom_call.1} parent=5 // pred_check_branch
        %227 = sbr.rel (%p225) target = $region40
      $region39: #{tpu_custom_call.1} parent=5 // pred_region
        %s228 = ssub.s32 %s14, 2
        // Predicated region
        $region41: #{tpu_custom_call.1} parent=39 // pred_check
          %p229 = pneg %p106
        $region42: #{tpu_custom_call.1} parent=39 // pred_check_branch
          %231 = sbr.rel (%p229) target = $region44
        $region43: #{tpu_custom_call.1} parent=39 // pred_region
          %s232 = sand.u32 %s91, 1
          %s233 = scalar_lea.sflag [#allocation4], %s232
          %s234 = sand.u32 %s91, 1
          %s235 = smul.addr %s234, 8
          %s236 = scalar_lea.vmem [#allocation5], %s235
          %237 = dma.done %s233, 128
        $region44: #{tpu_custom_call.1} parent=39 // pred_fallthru
          _
      $region40: #{tpu_custom_call.1} parent=5 // pred_fallthru
        _
    $region6: #{tpu_custom_call.1} parent=1 // loop_footer
      %s18 = sadd.s32 1, %s14
    $region7: #{tpu_custom_call.1} parent=1 // loop_footer_branch
      %13 = sbr.rel target = $region3
    $region8: #{tpu_custom_call.1} parent=1 // loop_exit
      _
    %238 = vsyncpa [#allocation3], 1
    %s239 = scalar_lea.sflag [#allocation3], 1
    %240 = vsyncpa %s239, 1
    %241 = vsyncpa [#allocation4], 1
    %s242 = scalar_lea.sflag [#allocation4], 1
    %243 = vsyncpa %s242, 1

</llo_original>
